<compile_context>
chip_gen: v6e
topology: v6e:2x2x1
jax: 0.10.0
libtpu: 0.0.40
codegen_flags: <defaults>
</compile_context>

<pallas_src>
import math

import jax
import jax.numpy as jnp
from jax.experimental import pallas as pl
from jax.experimental.pallas import tpu as pltpu


# ----------------------------- fused Pallas kernel -----------------------------

def make_fused_mlp_kernel(num_hidden):
    """Builds a kernel computing the whole MLP in one body.

    Ref layout (positional):
        alphas_ref                          SMEM (num_hidden,) f32   PReLU alphas
        x_ref                               VMEM (B, in_dim)   f32
        [w_i, shift_i] * num_hidden         VMEM bf16 / f32          BN-folded hidden layers
        w_out, b_out                        VMEM bf16 / f32          final Linear
        o_ref                               VMEM (B, out_dim)  f32
    """

    def kernel(alphas_ref, x_ref, *refs):
        o_ref = refs[-1]
        h = x_ref[...].astype(jnp.bfloat16)              # cast in-kernel (free on VPU)
        for i in range(num_hidden):                      # statically unrolled
            w = refs[2 * i][...]                         # bf16 (prev, hid), BN scale pre-folded
            shift = refs[2 * i + 1][...]                 # f32  (1, hid)
            y = jnp.dot(h, w, preferred_element_type=jnp.float32)   # MXU, f32 accumulate
            y = y + shift                                # f32 epilogue (v5e-safe)
            a = alphas_ref[i]                            # scalar PReLU alpha from SMEM
            y = jnp.where(y > 0.0, y, a * y)             # PReLU
            h = y.astype(jnp.bfloat16)                   # bf16 into the next MXU pass
        w_out = refs[2 * num_hidden][...]                # bf16 (hid_last, out)
        b_out = refs[2 * num_hidden + 1][...]            # f32  (1, out)
        o_ref[...] = (
            jnp.dot(h, w_out, preferred_element_type=jnp.float32) + b_out
        )

    return kernel


# ----------------------------- wrapper -----------------------------

def complex_mlp_forward(x, alphas, hidden_params, final_params):
    """Single fused pallas_call over the whole MLP (whole-array blocks, no grid)."""
    b_sz = x.shape[0]
    out_dim = final_params["w"].shape[1]
    num_hidden = len(hidden_params)

    operands = [alphas, x]
    in_specs = [
        pl.BlockSpec(memory_space=pltpu.MemorySpace.SMEM),   # alphas (scalars)
        pl.BlockSpec(memory_space=pltpu.MemorySpace.VMEM),   # x
    ]
    for p in hidden_params:
        operands += [p["w"], p["shift"]]
        in_specs += [pl.BlockSpec(memory_space=pltpu.MemorySpace.VMEM)] * 2
    operands += [final_params["w"], final_params["b"]]
    in_specs += [pl.BlockSpec(memory_space=pltpu.MemorySpace.VMEM)] * 2

    return pl.pallas_call(
        make_fused_mlp_kernel(num_hidden),
        out_shape=jax.ShapeDtypeStruct((b_sz, out_dim), jnp.float32),
        in_specs=in_specs,
        out_specs=pl.BlockSpec(memory_space=pltpu.MemorySpace.VMEM),
    )(*operands)


# ----------------------------- parameter init -----------------------------

def init_params(key, input_dim, output_dim, hidden_dims, eps=1e-5):
    """Deterministic init matching PyTorch defaults (Linear: U(-1/sqrt(fan_in), ..),
    BatchNorm1d: gamma=1 beta=0 running_mean=0 running_var=1, PReLU alpha=0.25).

    The BN running-stat affine is folded into the weights/shift:
        scale = gamma / sqrt(running_var + eps)
        w'    = w * scale            (per output column)
        shift = (linear_bias - running_mean) * scale + beta
    Weights are stored [in, out] (transposed vs PyTorch) and cast to bf16.
    """
    hidden_params = []
    alphas = []
    prev = input_dim
    for h in hidden_dims:
        key, k_w, k_b = jax.random.split(key, 3)
        bound = 1.0 / math.sqrt(prev)
        w = jax.random.uniform(k_w, (prev, h), jnp.float32, -bound, bound)
        lb = jax.random.uniform(k_b, (h,), jnp.float32, -bound, bound)
        gamma = jnp.ones((h,), jnp.float32)
        beta = jnp.zeros((h,), jnp.float32)
        running_mean = jnp.zeros((h,), jnp.float32)
        running_var = jnp.ones((h,), jnp.float32)
        scale = gamma / jnp.sqrt(running_var + eps)
        w_folded = (w * scale[None, :]).astype(jnp.bfloat16)
        shift = ((lb - running_mean) * scale + beta).reshape(1, h)
        hidden_params.append(dict(w=w_folded, shift=shift))
        alphas.append(0.25)
        prev = h
    key, k_w, k_b = jax.random.split(key, 3)
    bound = 1.0 / math.sqrt(prev)
    w = jax.random.uniform(k_w, (prev, output_dim), jnp.float32, -bound, bound)
    lb = jax.random.uniform(k_b, (output_dim,), jnp.float32, -bound, bound)
    final_params = dict(w=w.astype(jnp.bfloat16), b=lb.reshape(1, output_dim))
    alphas = jnp.array(alphas, jnp.float32)
    return alphas, hidden_params, final_params


# ----------------------------- pure-JAX reference -----------------------------

def complex_mlp_reference(x, alphas, hidden_params, final_params):
    """Mirrors the kernel math exactly (bf16 operands, f32 accumulation/epilogue)."""
    h = x.astype(jnp.bfloat16)
    for i, p in enumerate(hidden_params):
        y = jnp.dot(h, p["w"], preferred_element_type=jnp.float32) + p["shift"]
        a = alphas[i]
        y = jnp.where(y > 0.0, y, a * y)
        h = y.astype(jnp.bfloat16)
    return jnp.dot(h, final_params["w"], preferred_element_type=jnp.float32) + final_params["b"]


# ----------------------------- main -----------------------------

if __name__ == "__main__":
    BATCH = 8
    INPUT_DIM = 32
    HIDDEN_DIMS = (64, 48)
    OUTPUT_DIM = 16

    key = jax.random.PRNGKey(0)
    key, k_x = jax.random.split(key)
    x = jax.random.normal(k_x, (BATCH, INPUT_DIM), jnp.float32)

    alphas, hidden_params, final_params = init_params(
        key, INPUT_DIM, OUTPUT_DIM, HIDDEN_DIMS
    )

    out = complex_mlp_forward(x, alphas, hidden_params, final_params)
    out = jax.block_until_ready(out)

    ref = complex_mlp_reference(x, alphas, hidden_params, final_params)
    assert out.shape == (BATCH, OUTPUT_DIM), out.shape
    assert jnp.allclose(out, ref, atol=1e-2, rtol=1e-2), "mismatch vs JAX reference"

    print("KERNEL_OK")
</pallas_src>

<mosaic_0001>
module attributes {stable_mosaic.version = 11 : i64} {
  func.func @kernel(%arg0: memref<2xf32, #tpu.memory_space<smem>>, %arg1: memref<8x32xf32, #tpu.memory_space<vmem>>, %arg2: memref<32x64xbf16, #tpu.memory_space<vmem>>, %arg3: memref<1x64xf32, #tpu.memory_space<vmem>>, %arg4: memref<64x48xbf16, #tpu.memory_space<vmem>>, %arg5: memref<1x48xf32, #tpu.memory_space<vmem>>, %arg6: memref<48x16xbf16, #tpu.memory_space<vmem>>, %arg7: memref<1x16xf32, #tpu.memory_space<vmem>>, %arg8: memref<8x16xf32, #tpu.memory_space<vmem>>) attributes {dimension_semantics = [], scalar_prefetch = 0 : i64, scratch_operands = 0 : i64, tpu.core_type = #tpu.core_type<tc>} {
    %c0 = arith.constant 0 : index
    %c0_0 = arith.constant 0 : index
    %0 = vector.load %arg1[%c0, %c0_0] : memref<8x32xf32, #tpu.memory_space<vmem>>, vector<8x32xf32>
    %1 = arith.truncf %0 : vector<8x32xf32> to vector<8x32xbf16>
    %c0_1 = arith.constant 0 : index
    %c0_2 = arith.constant 0 : index
    %2 = vector.load %arg2[%c0_1, %c0_2] : memref<32x64xbf16, #tpu.memory_space<vmem>>, vector<32x64xbf16>
    %c0_3 = arith.constant 0 : index
    %c0_4 = arith.constant 0 : index
    %3 = vector.load %arg3[%c0_3, %c0_4] : memref<1x64xf32, #tpu.memory_space<vmem>>, vector<1x64xf32>
    %cst = arith.constant dense<0.000000e+00> : vector<8x64xf32>
    %4 = tpu.matmul %1, %2, %cst {dimension_numbers = #tpu.dot_dimension_numbers<[1], [0], [0], [1], [0, 0, 1, 1], [], []>} : vector<8x32xbf16>, vector<32x64xbf16>, vector<8x64xf32> -> vector<8x64xf32>
    %5 = vector.broadcast %3 : vector<1x64xf32> to vector<8x64xf32>
    %6 = arith.addf %4, %5 : vector<8x64xf32>
    %c0_5 = arith.constant 0 : index
    %7 = memref.load %arg0[%c0_5] : memref<2xf32, #tpu.memory_space<smem>>
    %cst_6 = arith.constant 0.000000e+00 : f32
    %8 = vector.broadcast %cst_6 : f32 to vector<8x64xf32>
    %9 = arith.cmpf ogt, %6, %8 : vector<8x64xf32>
    %10 = vector.broadcast %7 : f32 to vector<8x64xf32>
    %11 = arith.mulf %10, %6 : vector<8x64xf32>
    %12 = arith.select %9, %6, %11 : vector<8x64xi1>, vector<8x64xf32>
    %13 = arith.truncf %12 : vector<8x64xf32> to vector<8x64xbf16>
    %c0_7 = arith.constant 0 : index
    %c0_8 = arith.constant 0 : index
    %14 = vector.load %arg4[%c0_7, %c0_8] : memref<64x48xbf16, #tpu.memory_space<vmem>>, vector<64x48xbf16>
    %c0_9 = arith.constant 0 : index
    %c0_10 = arith.constant 0 : index
    %15 = vector.load %arg5[%c0_9, %c0_10] : memref<1x48xf32, #tpu.memory_space<vmem>>, vector<1x48xf32>
    %cst_11 = arith.constant dense<0.000000e+00> : vector<8x48xf32>
    %16 = tpu.matmul %13, %14, %cst_11 {dimension_numbers = #tpu.dot_dimension_numbers<[1], [0], [0], [1], [0, 0, 1, 1], [], []>} : vector<8x64xbf16>, vector<64x48xbf16>, vector<8x48xf32> -> vector<8x48xf32>
    %17 = vector.broadcast %15 : vector<1x48xf32> to vector<8x48xf32>
    %18 = arith.addf %16, %17 : vector<8x48xf32>
    %c1 = arith.constant 1 : index
    %19 = memref.load %arg0[%c1] : memref<2xf32, #tpu.memory_space<smem>>
    %cst_12 = arith.constant 0.000000e+00 : f32
    %20 = vector.broadcast %cst_12 : f32 to vector<8x48xf32>
    %21 = arith.cmpf ogt, %18, %20 : vector<8x48xf32>
    %22 = vector.broadcast %19 : f32 to vector<8x48xf32>
    %23 = arith.mulf %22, %18 : vector<8x48xf32>
    %24 = arith.select %21, %18, %23 : vector<8x48xi1>, vector<8x48xf32>
    %25 = arith.truncf %24 : vector<8x48xf32> to vector<8x48xbf16>
    %c0_13 = arith.constant 0 : index
    %c0_14 = arith.constant 0 : index
    %26 = vector.load %arg6[%c0_13, %c0_14] : memref<48x16xbf16, #tpu.memory_space<vmem>>, vector<48x16xbf16>
    %c0_15 = arith.constant 0 : index
    %c0_16 = arith.constant 0 : index
    %27 = vector.load %arg7[%c0_15, %c0_16] : memref<1x16xf32, #tpu.memory_space<vmem>>, vector<1x16xf32>
    %cst_17 = arith.constant dense<0.000000e+00> : vector<8x16xf32>
    %28 = tpu.matmul %25, %26, %cst_17 {dimension_numbers = #tpu.dot_dimension_numbers<[1], [0], [0], [1], [0, 0, 1, 1], [], []>} : vector<8x48xbf16>, vector<48x16xbf16>, vector<8x16xf32> -> vector<8x16xf32>
    %29 = vector.broadcast %27 : vector<1x16xf32> to vector<8x16xf32>
    %30 = arith.addf %28, %29 : vector<8x16xf32>
    %c0_18 = arith.constant 0 : index
    %c0_19 = arith.constant 0 : index
    %31 = vector.load %arg8[%c0_18, %c0_19] : memref<8x16xf32, #tpu.memory_space<vmem>>, vector<8x16xf32>
    tpu.vector_store %arg8[%c0_18, %c0_19], %30 {strides = array<i32>} : memref<8x16xf32, #tpu.memory_space<vmem>>, vector<8x16xf32>,
    return
  }
}

</mosaic_0001>

<llo_original>
// kernel: tpu_custom_call.1
$region0: #{tpu_custom_call.1}
  #allocation0 [shape = 'u32[]', space=smem, size = 0x4, offset = 0x4, fixed_abs, tag = 'smem constant byte address 0x4 - core index']
  #allocation1 [shape = 'u32[144,128]{1,0:T(1,128)}', space=vmem, size = 0x12000, scoped, tag = 'internal scratch']
  %s0 = inlined_call_operand.vmem [shape: f32[2], index: 0, kind: input, shape index: {}]
  %s1 = inlined_call_operand.vmem [shape: f32[8,32], index: 1, kind: input, shape index: {}]
  %s2 = inlined_call_operand.vmem [shape: bf16[32,64], index: 2, kind: input, shape index: {}]
  %s3 = inlined_call_operand.vmem [shape: f32[1,64], index: 3, kind: input, shape index: {}]
  %s4 = inlined_call_operand.vmem [shape: bf16[64,48], index: 4, kind: input, shape index: {}]
  %s5 = inlined_call_operand.vmem [shape: f32[1,48], index: 5, kind: input, shape index: {}]
  %s6 = inlined_call_operand.vmem [shape: bf16[48,16], index: 6, kind: input, shape index: {}]
  %s7 = inlined_call_operand.vmem [shape: f32[1,16], index: 7, kind: input, shape index: {}]
  %s8 = inlined_call_operand.hbm [shape: f32[8,16], index: 8, kind: output, shape index: {}]
  %s9 = sld [smem:[#allocation0]]
  $region46: #{tpu_custom_call.1} parent=0
    _
  %s11 = ssub.s32 1, %s9
  %s12 = scalar_select 0, %s11, %s9
  $region1: #{tpu_custom_call.1} parent=0
    #allocation2 [shape = 'u8[512]{0}', space=smem, size = 0x200, scoped, tag = 'input window, operand 0, single buffered']
    #allocation3 [shape = 's32[1]{0}', space=sflag, size = 0x4, scoped, tag = 'scoped memory for tpu_custom_call.1']
    #allocation4 [shape = 's32[1]{0}', space=sflag, size = 0x4, scoped, tag = 'scoped memory for tpu_custom_call.1']
    #allocation5 [shape = 'u8[4096]{0}', space=vmem, size = 0x1000, scoped, tag = 'output window, operand 0, single buffered']
    %13 = vsyncpa [#allocation4], 0
    %14 = vsyncpa [#allocation3], 0
    // Predicated region
    $region2: #{tpu_custom_call.1} parent=1 // pred_check
      _
    $region3: #{tpu_custom_call.1} parent=1 // pred_check_branch
      %16 = sbr.rel (0) target = $region5
    $region4: #{tpu_custom_call.1} parent=1 // pred_region
      %s18 = ssub.s32 16, 16
      %19 = vsyncadd [#allocation4], %s18
      %s21 = sshll.u32 %s0, 4
      %s22 = int_to_ptr.vmem [resolvable:$true] %s21
      %24 = dma.vmem_to_smem %s22, 16, [#allocation2], [#allocation4]
    $region5: #{tpu_custom_call.1} parent=1 // pred_fallthru
      _
    // Predicated region
    $region6: #{tpu_custom_call.1} parent=1 // pred_check
      _
    $region7: #{tpu_custom_call.1} parent=1 // pred_check_branch
      %26 = sbr.rel (0) target = $region9
    $region8: #{tpu_custom_call.1} parent=1 // pred_region
      _
    $region9: #{tpu_custom_call.1} parent=1 // pred_fallthru
      _
    // Predicated region
    $region10: #{tpu_custom_call.1} parent=1 // pred_check
      _
    $region11: #{tpu_custom_call.1} parent=1 // pred_check_branch
      %28 = sbr.rel (0) target = $region13
    $region12: #{tpu_custom_call.1} parent=1 // pred_region
      _
    $region13: #{tpu_custom_call.1} parent=1 // pred_fallthru
      _
    // Predicated region
    $region14: #{tpu_custom_call.1} parent=1 // pred_check
      _
    $region15: #{tpu_custom_call.1} parent=1 // pred_check_branch
      %30 = sbr.rel (0) target = $region17
    $region16: #{tpu_custom_call.1} parent=1 // pred_region
      _
    $region17: #{tpu_custom_call.1} parent=1 // pred_fallthru
      _
    // Predicated region
    $region18: #{tpu_custom_call.1} parent=1 // pred_check
      _
    $region19: #{tpu_custom_call.1} parent=1 // pred_check_branch
      %32 = sbr.rel (0) target = $region21
    $region20: #{tpu_custom_call.1} parent=1 // pred_region
      _
    $region21: #{tpu_custom_call.1} parent=1 // pred_fallthru
      _
    // Predicated region
    $region22: #{tpu_custom_call.1} parent=1 // pred_check
      _
    $region23: #{tpu_custom_call.1} parent=1 // pred_check_branch
      %34 = sbr.rel (0) target = $region25
    $region24: #{tpu_custom_call.1} parent=1 // pred_region
      _
    $region25: #{tpu_custom_call.1} parent=1 // pred_fallthru
      _
    // Predicated region
    $region26: #{tpu_custom_call.1} parent=1 // pred_check
      _
    $region27: #{tpu_custom_call.1} parent=1 // pred_check_branch
      %36 = sbr.rel (0) target = $region29
    $region28: #{tpu_custom_call.1} parent=1 // pred_region
      _
    $region29: #{tpu_custom_call.1} parent=1 // pred_fallthru
      _
    // Predicated region
    $region30: #{tpu_custom_call.1} parent=1 // pred_check
      _
    $region31: #{tpu_custom_call.1} parent=1 // pred_check_branch
      %38 = sbr.rel (0) target = $region33
    $region32: #{tpu_custom_call.1} parent=1 // pred_region
      _
    $region33: #{tpu_custom_call.1} parent=1 // pred_fallthru
      _
    // Predicated region
    $region34: #{tpu_custom_call.1} parent=1 // pred_check
      _
    $region35: #{tpu_custom_call.1} parent=1 // pred_check_branch
      %40 = sbr.rel (0) target = $region37
    $region36: #{tpu_custom_call.1} parent=1 // pred_region
      %41 = dma.done [#allocation4], 16
    $region37: #{tpu_custom_call.1} parent=1 // pred_fallthru
      _
    %42 = sfence
    %v44 = vld [vmem:[%s1] sm:$0xff]
    %v45 = vpack.c.bf16 %v44, %v44
    %v46 = vld [vmem:[%s2] sm:$0xf]
    %v47 = vld [vmem:[%s2 + $0x4] sm:$0xf]
    %v48 = vld [vmem:[%s2 + $0x8] sm:$0xf]
    %v49 = vld [vmem:[%s2 + $0xc] sm:$0xf]
    %v50 = vld [vmem:[%s3] sm:$0x1]
    %v52 = vlaneseq
    %v53 = vshrl.u32 %v52, 7
    %v54 = vsub.s32 0, %v53
    %v55 = vrot.slane %v50, %v54
    %v61 = vunpack.c.l.b16 %v46
    %v62 = vunpack.c.l.b16 %v47
    %v63 = vunpack.c.l.b16 %v48
    %v64 = vunpack.c.l.b16 %v49
    %v65 = vpack.c.b16 %v62, %v61
    %v66 = vpack.c.b16 %v64, %v63
    %vm69 = vcmask 261120
    %v71 = vsel %vm69, %v45, 0
    %73 = vmatprep.subr.bf16.mxu0 0
    %74 = vmatpush1.bf16.msra.mxu0 0
    %75 = vmatprep.subr.bf16.mxu0 0
    %76 = vmatpush1.bf16.msra.mxu0 0
    %77 = vmatprep.subr.bf16.mxu0 0
    %78 = vmatpush1.bf16.msra.mxu0 0
    %79 = vmatprep.subr.bf16.mxu0 0
    %80 = vmatpush1.bf16.msra.mxu0 0
    %81 = vmatprep.subr.bf16.mxu0 0
    %82 = vmatpush1.bf16.msra.mxu0 0
    %83 = vmatprep.subr.bf16.mxu0 0
    %84 = vmatpush1.bf16.msra.mxu0 0
    %85 = vmatprep.subr.bf16.mxu0 0
    %86 = vmatpush1.bf16.msra.mxu0 %v66
    %87 = vmatprep.subr.bf16.mxu0 0
    %88 = vmatpush1.bf16.msra.mxu0 %v65
    %89 = vmatprep.subr.bf16.mxu0 0
    %90 = vmatpush2.bf16.msra.mxu0 0
    %91 = vmatprep.subr.bf16.mxu0 0
    %92 = vmatpush2.bf16.msra.mxu0 0
    %93 = vmatprep.subr.bf16.mxu0 0
    %94 = vmatpush2.bf16.msra.mxu0 0
    %95 = vmatprep.subr.bf16.mxu0 0
    %96 = vmatpush2.bf16.msra.mxu0 0
    %97 = vmatprep.subr.bf16.mxu0 0
    %98 = vmatpush2.bf16.msra.mxu0 0
    %99 = vmatprep.subr.bf16.mxu0 0
    %100 = vmatpush2.bf16.msra.mxu0 0
    %101 = vmatprep.subr.bf16.mxu0 0
    %102 = vmatpush2.bf16.msra.mxu0 0
    %103 = vmatprep.subr.bf16.mxu0 0
    %104 = vmatpush2.bf16.msra.mxu0 0
    %105 = vmatprep.mubr.bf16.mxu0 0
    %106 = vmatmul.mubr.bf16.gmra.mxu0 %v71
    %v107 = vpop.f32.mrf.mxu0
    %v108 = vadd.f32 %v55, %v107
    %v109 = vpop.f32.mrf.mxu0
    %v110 = vpop.f32.mrf.mxu0
    %v111 = vpop.f32.mrf.mxu0
    %112 = vdwg.mxu0
    %s113 = sld [smem:[#allocation2]]
    %vm114 = vcmp.gt.f32.partialorder %v108, 0.0
    %v115 = vstv %s113
    %v116 = vmul.f32 %v115, %v108
    %v117 = vsel %vm114, %v108, %v116
    %v118 = vpack.c.bf16 %v117, %v117
    %v119 = vld [vmem:[%s4] sm:$0xf]
    %v120 = vld [vmem:[%s4 + $0x4] sm:$0xf]
    %v121 = vld [vmem:[%s4 + $0x8] sm:$0xf]
    %v122 = vld [vmem:[%s4 + $0xc] sm:$0xf]
    %v123 = vld [vmem:[%s4 + $0x10] sm:$0xf]
    %v124 = vld [vmem:[%s4 + $0x14] sm:$0xf]
    %v125 = vld [vmem:[%s4 + $0x18] sm:$0xf]
    %v126 = vld [vmem:[%s4 + $0x1c] sm:$0xf]
    %v127 = vld [vmem:[%s5] sm:$0x1]
    %v129 = vlaneseq
    %v130 = vshrl.u32 %v129, 7
    %v131 = vsub.s32 0, %v130
    %v132 = vrot.slane %v127, %v131
    %v142 = vunpack.c.l.b16 %v119
    %v143 = vunpack.c.l.b16 %v120
    %v144 = vunpack.c.l.b16 %v121
    %v145 = vunpack.c.l.b16 %v122
    %v146 = vunpack.c.l.b16 %v123
    %v147 = vunpack.c.l.b16 %v124
    %v148 = vunpack.c.l.b16 %v125
    %v149 = vunpack.c.l.b16 %v126
    %v150 = vpack.c.b16 %v143, %v142
    %v151 = vpack.c.b16 %v145, %v144
    %v152 = vpack.c.b16 %v147, %v146
    %v153 = vpack.c.b16 %v149, %v148
    %vm158 = vcmask 523264
    %v160 = vsel %vm158, %v118, 0
    %162 = vmatprep.subr.bf16.mxu0 0
    %163 = vmatpush1.bf16.msra.mxu0 0
    %164 = vmatprep.subr.bf16.mxu0 0
    %165 = vmatpush1.bf16.msra.mxu0 0
    %166 = vmatprep.subr.bf16.mxu0 0
    %167 = vmatpush1.bf16.msra.mxu0 0
    %168 = vmatprep.subr.bf16.mxu0 0
    %169 = vmatpush1.bf16.msra.mxu0 0
    %170 = vmatprep.subr.bf16.mxu0 0
    %171 = vmatpush1.bf16.msra.mxu0 %v153
    %172 = vmatprep.subr.bf16.mxu0 0
    %173 = vmatpush1.bf16.msra.mxu0 %v152
    %174 = vmatprep.subr.bf16.mxu0 0
    %175 = vmatpush1.bf16.msra.mxu0 %v151
    %176 = vmatprep.subr.bf16.mxu0 0
    %177 = vmatpush1.bf16.msra.mxu0 %v150
    %178 = vmatprep.subr.bf16.mxu0 0
    %179 = vmatpush2.bf16.msra.mxu0 0
    %180 = vmatprep.subr.bf16.mxu0 0
    %181 = vmatpush2.bf16.msra.mxu0 0
    %182 = vmatprep.subr.bf16.mxu0 0
    %183 = vmatpush2.bf16.msra.mxu0 0
    %184 = vmatprep.subr.bf16.mxu0 0
    %185 = vmatpush2.bf16.msra.mxu0 0
    %186 = vmatprep.subr.bf16.mxu0 0
    %187 = vmatpush2.bf16.msra.mxu0 0
    %188 = vmatprep.subr.bf16.mxu0 0
    %189 = vmatpush2.bf16.msra.mxu0 0
    %190 = vmatprep.subr.bf16.mxu0 0
    %191 = vmatpush2.bf16.msra.mxu0 0
    %192 = vmatprep.subr.bf16.mxu0 0
    %193 = vmatpush2.bf16.msra.mxu0 0
    %194 = vmatprep.mubr.bf16.mxu0 0
    %195 = vmatmul.mubr.bf16.gmra.mxu0 %v160
    %v196 = vpop.f32.mrf.mxu0
    %v197 = vadd.f32 %v132, %v196
    %v198 = vpop.f32.mrf.mxu0
    %v199 = vpop.f32.mrf.mxu0
    %v200 = vpop.f32.mrf.mxu0
    %201 = vdwg.mxu0
    %s202 = sld [smem:[#allocation2 + $0x1]]
    %vm203 = vcmp.gt.f32.partialorder %v197, 0.0
    %v204 = vstv %s202
    %v205 = vmul.f32 %v204, %v197
    %v206 = vsel %vm203, %v197, %v205
    %v207 = vpack.c.bf16 %v206, %v206
    %v208 = vld [vmem:[%s6] sm:$0xf]
    %v209 = vld [vmem:[%s6 + $0x4] sm:$0xf]
    %v210 = vld [vmem:[%s6 + $0x8] sm:$0xf]
    %v211 = vld [vmem:[%s6 + $0xc] sm:$0xf]
    %v212 = vld [vmem:[%s6 + $0x10] sm:$0xf]
    %v213 = vld [vmem:[%s6 + $0x14] sm:$0xf]
    %v214 = vld [vmem:[%s7] sm:$0x1]
    %v216 = vlaneseq
    %v217 = vshrl.u32 %v216, 7
    %v218 = vsub.s32 0, %v217
    %v219 = vrot.slane %v214, %v218
    %v227 = vunpack.c.l.b16 %v208
    %v228 = vunpack.c.l.b16 %v209
    %v229 = vunpack.c.l.b16 %v210
    %v230 = vunpack.c.l.b16 %v211
    %v231 = vunpack.c.l.b16 %v212
    %v232 = vunpack.c.l.b16 %v213
    %v233 = vpack.c.b16 %v228, %v227
    %v234 = vpack.c.b16 %v230, %v229
    %v235 = vpack.c.b16 %v232, %v231
    %vm239 = vcmask 392192
    %v241 = vsel %vm239, %v207, 0
    %243 = vmatprep.subr.bf16.mxu0 0
    %244 = vmatpush1.bf16.msra.mxu0 0
    %245 = vmatprep.subr.bf16.mxu0 0
    %246 = vmatpush1.bf16.msra.mxu0 0
    %247 = vmatprep.subr.bf16.mxu0 0
    %248 = vmatpush1.bf16.msra.mxu0 0
    %249 = vmatprep.subr.bf16.mxu0 0
    %250 = vmatpush1.bf16.msra.mxu0 0
    %251 = vmatprep.subr.bf16.mxu0 0
    %252 = vmatpush1.bf16.msra.mxu0 0
    %253 = vmatprep.subr.bf16.mxu0 0
    %254 = vmatpush1.bf16.msra.mxu0 %v235
    %255 = vmatprep.subr.bf16.mxu0 0
    %256 = vmatpush1.bf16.msra.mxu0 %v234
    %257 = vmatprep.subr.bf16.mxu0 0
    %258 = vmatpush1.bf16.msra.mxu0 %v233
    %259 = vmatprep.subr.bf16.mxu0 0
    %260 = vmatpush2.bf16.msra.mxu0 0
    %261 = vmatprep.subr.bf16.mxu0 0
    %262 = vmatpush2.bf16.msra.mxu0 0
    %263 = vmatprep.subr.bf16.mxu0 0
    %264 = vmatpush2.bf16.msra.mxu0 0
    %265 = vmatprep.subr.bf16.mxu0 0
    %266 = vmatpush2.bf16.msra.mxu0 0
    %267 = vmatprep.subr.bf16.mxu0 0
    %268 = vmatpush2.bf16.msra.mxu0 0
    %269 = vmatprep.subr.bf16.mxu0 0
    %270 = vmatpush2.bf16.msra.mxu0 0
    %271 = vmatprep.subr.bf16.mxu0 0
    %272 = vmatpush2.bf16.msra.mxu0 0
    %273 = vmatprep.subr.bf16.mxu0 0
    %274 = vmatpush2.bf16.msra.mxu0 0
    %275 = vmatprep.mubr.bf16.mxu0 0
    %276 = vmatmul.mubr.bf16.gmra.mxu0 %v241
    %v277 = vpop.f32.mrf.mxu0
    %v278 = vadd.f32 %v219, %v277
    %v279 = vpop.f32.mrf.mxu0
    %v280 = vpop.f32.mrf.mxu0
    %v281 = vpop.f32.mrf.mxu0
    %282 = vdwg.mxu0
    %vm283 = vcmask 130048
    %284 = vst.msk [vmem:[#allocation5] sm:$0xff] %vm283, %v278
    // Predicated region
    $region38: #{tpu_custom_call.1} parent=1 // pred_check
      _
    $region39: #{tpu_custom_call.1} parent=1 // pred_check_branch
      %286 = sbr.rel (0) target = $region41
    $region40: #{tpu_custom_call.1} parent=1 // pred_region
      %s288 = ssub.s32 128, 128
      %289 = vsyncadd [#allocation3], %s288
      %s291 = sshll.u32 [#allocation5], 4
      %s292 = int_to_ptr.vmem [resolvable:$true] %s291
      %294 = dma.vmem_to_hbm [thread:$0]  %s292, 128, %s8, [#allocation3]
    $region41: #{tpu_custom_call.1} parent=1 // pred_fallthru
      _
    // Predicated region
    $region42: #{tpu_custom_call.1} parent=1 // pred_check
      _
    $region43: #{tpu_custom_call.1} parent=1 // pred_check_branch
      %296 = sbr.rel (0) target = $region45
    $region44: #{tpu_custom_call.1} parent=1 // pred_region
      %297 = dma.done [#allocation3], 128
    $region45: #{tpu_custom_call.1} parent=1 // pred_fallthru
      _
    %298 = vsyncpa [#allocation3], 1
    %299 = vsyncpa [#allocation4], 1

</llo_original>
